<compile_context>
chip_gen: v7x
topology: tpu7x:2x2x1
jax: 0.10.0
libtpu: 0.0.40
codegen_flags: <defaults>
</compile_context>

<pallas_src>
import math
import functools

import jax
import jax.numpy as jnp
from jax.experimental import pallas as pl
from jax.experimental.pallas import tpu as pltpu

# (in_features, out_features) per layer, matching the PyTorch nn.Sequential.
LAYER_DIMS = [(2, 20), (20, 30), (30, 30), (30, 20), (20, 20), (20, 1)]
NUM_LAYERS = len(LAYER_DIMS)

FPAD = 32                 # packed weight tile width (covers max 30, mult. of 8)
BIAS_COL = FPAD - 1       # bias column for layers 1..5
XROWS = 8                 # padded input rows: x in rows 0-1, ones in row 2
ONES_ROW = 2              # layer-0 bias folded through this input row
TM_TARGET = 16384         # batch-tile target (lanes)

# Per-layer (padded_out_rows, padded_in_rows, bias_folded_into_matmul).
LAYER_PLAN = [
    (24, XROWS, True),    #  2 -> 20   bias via ones row (col 2 of W0)
    (32, 24,   False),    # 20 -> 30
    (32, 32,   False),    # 30 -> 30
    (24, 32,   False),    # 30 -> 20
    (24, 24,   False),    # 20 -> 20
    (8,  24,   False),    # 20 -> 1    output layer (no tanh, only row 0 real)
]


def _round_up(v, m):
    return (v + m - 1) // m * m


def _mlp_kernel(x_ref, p_ref, o_ref):
    # x_ref: (8, tm)      rows 0-1 = features, row 2 = 1.0, rows 3-7 = 0
    # p_ref: (6, 32, 32)  zero-padded [W | bias column]
    # o_ref: (1, tm)
    h = x_ref[...].astype(jnp.float32)
    for l, (ro, ri, folded) in enumerate(LAYER_PLAN):
        w = p_ref[l]                                                # (32, 32)
        z = jnp.dot(w[:ro, :ri], h, preferred_element_type=jnp.float32)
        if l < NUM_LAYERS - 1:
            if not folded:
                z = z + w[:ro, BIAS_COL:]                           # (ro, 1) bcast
            # Padded weight rows are zero -> padded rows of z are 0 -> tanh(0)=0,
            # so the trimmed h stays exactly consistent with the reference.
            h = jnp.tanh(z)                                         # (ro, tm)
        else:
            h = z[:1, :] + w[:1, BIAS_COL:]                         # (1, tm)
    o_ref[...] = h.astype(o_ref.dtype)


def pack_params(params):
    """Pack [(W(out,in), b(out,)), ...] into one zero-padded (6, 32, 32) jnp array."""
    packed = jnp.zeros((NUM_LAYERS, FPAD, FPAD), jnp.float32)
    for l, (w, b) in enumerate(params):
        out_f, in_f = w.shape
        bias_col = ONES_ROW if l == 0 else BIAS_COL
        packed = packed.at[l, :out_f, :in_f].set(w.astype(jnp.float32))
        packed = packed.at[l, :out_f, bias_col].set(b.astype(jnp.float32))
    return packed


def _choose_tm(n):
    """Batch tile: multiple of 128, capped so the 'parallel' grid axis has >= 2
    steps whenever possible (shards across v7x's two TensorCores)."""
    n128 = _round_up(n, 128)
    half = _round_up((n128 + 1) // 2, 128)
    return max(128, min(_round_up(TM_TARGET, 128), half))


@jax.jit
def mlp_forward(x, packed):
    """x: (N, 2) float32. packed: (6, 32, 32) from pack_params. Returns (N, 1)."""
    n, din = x.shape
    assert din == LAYER_DIMS[0][0]
    tm = _choose_tm(n)
    n_pad = _round_up(n, tm)

    # Build the (8, n_pad) feature-major slab with the ones row for the layer-0
    # bias fold.  Padding columns compute the net on (0, 0); sliced off below.
    xt = jnp.zeros((XROWS, n_pad), jnp.float32)
    xt = xt.at[:din, :n].set(x.T.astype(jnp.float32))
    xt = xt.at[ONES_ROW, :].set(1.0)

    out = pl.pallas_call(
        _mlp_kernel,
        out_shape=jax.ShapeDtypeStruct((1, n_pad), x.dtype),
        grid_spec=pltpu.PrefetchScalarGridSpec(
            num_scalar_prefetch=0,
            grid=(n_pad // tm,),
            in_specs=[
                pl.BlockSpec((XROWS, tm), lambda i: (0, i)),
                # Full packed-parameter block, resident across the whole grid.
                pl.BlockSpec((NUM_LAYERS, FPAD, FPAD), lambda i: (0, 0, 0)),
            ],
            out_specs=pl.BlockSpec((1, tm), lambda i: (0, i)),
        ),
        compiler_params=pltpu.CompilerParams(
            dimension_semantics=("parallel",),
            vmem_limit_bytes=48 * 1024 * 1024,
        ),
    )(xt, packed)

    return out[0, :n].reshape(n, 1)


def init_params(key):
    """PyTorch nn.Linear default init: U(-1/sqrt(fan_in), 1/sqrt(fan_in))."""
    params = []
    for fan_in, fan_out in LAYER_DIMS:
        key, kw, kb = jax.random.split(key, 3)
        bound = 1.0 / math.sqrt(fan_in)
        w = jax.random.uniform(kw, (fan_out, fan_in), jnp.float32, -bound, bound)
        b = jax.random.uniform(kb, (fan_out,), jnp.float32, -bound, bound)
        params.append((w, b))
    return params


def mlp_reference(x, params):
    h = x
    for i, (w, b) in enumerate(params):
        h = h @ w.T + b
        if i < len(params) - 1:
            h = jnp.tanh(h)
    return h


if __name__ == "__main__":
    key = jax.random.PRNGKey(0)
    kp, kx = jax.random.split(key)
    params = init_params(kp)
    packed = pack_params(params)          # packed once, reused across calls

    # 200 2-D points (mirrors the original torch.arange(-1, 1, 0.01) grid size);
    # deliberately NOT a multiple of 128 to exercise the padding path.
    n = 200
    x = jax.random.uniform(kx, (n, 2), jnp.float32, -1.0, 1.0)

    out = mlp_forward(x, packed)
    out = jax.block_until_ready(out)

    ref = mlp_reference(x, params)
    assert out.shape == (n, 1)
    assert jnp.allclose(out, ref, atol=1e-4, rtol=1e-4), "mismatch vs reference"

    print("KERNEL_OK")
</pallas_src>

<mosaic_0001>
module attributes {stable_mosaic.version = 11 : i64} {
  func.func @_mlp_kernel(%arg0: i32, %arg1: memref<8x128xf32, #tpu.memory_space<vmem>>, %arg2: memref<6x32x32xf32, #tpu.memory_space<vmem>>, %arg3: memref<1x128xf32, #tpu.memory_space<vmem>>) attributes {dimension_semantics = [#tpu.dimension_semantics<parallel>], iteration_bounds = array<i64: 2>, scalar_prefetch = 0 : i64, scratch_operands = 0 : i64, tpu.core_type = #tpu.core_type<tc>, window_params = [{transform_indices = @transform_0, window_bounds = array<i64: 8, 128>}, {pipeline_mode = #tpu.pipeline_mode<synchronous>, transform_indices = @transform_1, window_bounds = array<i64: 6, 32, 32>}, {transform_indices = @transform_2, window_bounds = array<i64: 1, 128>}]} {
    %c0 = arith.constant 0 : index
    %c0_0 = arith.constant 0 : index
    %0 = vector.load %arg1[%c0, %c0_0] : memref<8x128xf32, #tpu.memory_space<vmem>>, vector<8x128xf32>
    %c0_1 = arith.constant 0 : index
    %c0_2 = arith.constant 0 : index
    %c0_3 = arith.constant 0 : index
    %1 = vector.load %arg2[%c0_1, %c0_2, %c0_3] : memref<6x32x32xf32, #tpu.memory_space<vmem>>, vector<1x32x32xf32>
    %2 = vector.shape_cast %1 : vector<1x32x32xf32> to vector<32x32xf32>
    %3 = vector.extract_strided_slice %2 {offsets = [0, 0], sizes = [24, 8], strides = [1, 1]} : vector<32x32xf32> to vector<24x8xf32>
    %cst = arith.constant dense<0.000000e+00> : vector<24x128xf32>
    %4 = tpu.matmul %3, %0, %cst {dimension_numbers = #tpu.dot_dimension_numbers<[1], [0], [0], [1], [0, 0, 1, 1], [], []>} : vector<24x8xf32>, vector<8x128xf32>, vector<24x128xf32> -> vector<24x128xf32>
    %5 = math.tanh %4 : vector<24x128xf32>
    %c1 = arith.constant 1 : index
    %c0_4 = arith.constant 0 : index
    %c0_5 = arith.constant 0 : index
    %6 = vector.load %arg2[%c1, %c0_4, %c0_5] : memref<6x32x32xf32, #tpu.memory_space<vmem>>, vector<1x32x32xf32>
    %7 = vector.shape_cast %6 : vector<1x32x32xf32> to vector<32x32xf32>
    %8 = vector.extract_strided_slice %7 {offsets = [0, 0], sizes = [32, 24], strides = [1, 1]} : vector<32x32xf32> to vector<32x24xf32>
    %cst_6 = arith.constant dense<0.000000e+00> : vector<32x128xf32>
    %9 = tpu.matmul %8, %5, %cst_6 {dimension_numbers = #tpu.dot_dimension_numbers<[1], [0], [0], [1], [0, 0, 1, 1], [], []>} : vector<32x24xf32>, vector<24x128xf32>, vector<32x128xf32> -> vector<32x128xf32>
    %10 = vector.extract_strided_slice %7 {offsets = [0, 31], sizes = [32, 1], strides = [1, 1]} : vector<32x32xf32> to vector<32x1xf32>
    %11 = vector.broadcast %10 : vector<32x1xf32> to vector<32x128xf32>
    %12 = arith.addf %9, %11 : vector<32x128xf32>
    %13 = math.tanh %12 : vector<32x128xf32>
    %c2 = arith.constant 2 : index
    %c0_7 = arith.constant 0 : index
    %c0_8 = arith.constant 0 : index
    %14 = vector.load %arg2[%c2, %c0_7, %c0_8] : memref<6x32x32xf32, #tpu.memory_space<vmem>>, vector<1x32x32xf32>
    %15 = vector.shape_cast %14 : vector<1x32x32xf32> to vector<32x32xf32>
    %cst_9 = arith.constant dense<0.000000e+00> : vector<32x128xf32>
    %16 = tpu.matmul %15, %13, %cst_9 {dimension_numbers = #tpu.dot_dimension_numbers<[1], [0], [0], [1], [0, 0, 1, 1], [], []>} : vector<32x32xf32>, vector<32x128xf32>, vector<32x128xf32> -> vector<32x128xf32>
    %17 = vector.extract_strided_slice %15 {offsets = [0, 31], sizes = [32, 1], strides = [1, 1]} : vector<32x32xf32> to vector<32x1xf32>
    %18 = vector.broadcast %17 : vector<32x1xf32> to vector<32x128xf32>
    %19 = arith.addf %16, %18 : vector<32x128xf32>
    %20 = math.tanh %19 : vector<32x128xf32>
    %c3 = arith.constant 3 : index
    %c0_10 = arith.constant 0 : index
    %c0_11 = arith.constant 0 : index
    %21 = vector.load %arg2[%c3, %c0_10, %c0_11] : memref<6x32x32xf32, #tpu.memory_space<vmem>>, vector<1x32x32xf32>
    %22 = vector.shape_cast %21 : vector<1x32x32xf32> to vector<32x32xf32>
    %23 = vector.extract_strided_slice %22 {offsets = [0, 0], sizes = [24, 32], strides = [1, 1]} : vector<32x32xf32> to vector<24x32xf32>
    %cst_12 = arith.constant dense<0.000000e+00> : vector<24x128xf32>
    %24 = tpu.matmul %23, %20, %cst_12 {dimension_numbers = #tpu.dot_dimension_numbers<[1], [0], [0], [1], [0, 0, 1, 1], [], []>} : vector<24x32xf32>, vector<32x128xf32>, vector<24x128xf32> -> vector<24x128xf32>
    %25 = vector.extract_strided_slice %22 {offsets = [0, 31], sizes = [24, 1], strides = [1, 1]} : vector<32x32xf32> to vector<24x1xf32>
    %26 = vector.broadcast %25 : vector<24x1xf32> to vector<24x128xf32>
    %27 = arith.addf %24, %26 : vector<24x128xf32>
    %28 = math.tanh %27 : vector<24x128xf32>
    %c4 = arith.constant 4 : index
    %c0_13 = arith.constant 0 : index
    %c0_14 = arith.constant 0 : index
    %29 = vector.load %arg2[%c4, %c0_13, %c0_14] : memref<6x32x32xf32, #tpu.memory_space<vmem>>, vector<1x32x32xf32>
    %30 = vector.shape_cast %29 : vector<1x32x32xf32> to vector<32x32xf32>
    %31 = vector.extract_strided_slice %30 {offsets = [0, 0], sizes = [24, 24], strides = [1, 1]} : vector<32x32xf32> to vector<24x24xf32>
    %cst_15 = arith.constant dense<0.000000e+00> : vector<24x128xf32>
    %32 = tpu.matmul %31, %28, %cst_15 {dimension_numbers = #tpu.dot_dimension_numbers<[1], [0], [0], [1], [0, 0, 1, 1], [], []>} : vector<24x24xf32>, vector<24x128xf32>, vector<24x128xf32> -> vector<24x128xf32>
    %33 = vector.extract_strided_slice %30 {offsets = [0, 31], sizes = [24, 1], strides = [1, 1]} : vector<32x32xf32> to vector<24x1xf32>
    %34 = vector.broadcast %33 : vector<24x1xf32> to vector<24x128xf32>
    %35 = arith.addf %32, %34 : vector<24x128xf32>
    %36 = math.tanh %35 : vector<24x128xf32>
    %c5 = arith.constant 5 : index
    %c0_16 = arith.constant 0 : index
    %c0_17 = arith.constant 0 : index
    %37 = vector.load %arg2[%c5, %c0_16, %c0_17] : memref<6x32x32xf32, #tpu.memory_space<vmem>>, vector<1x32x32xf32>
    %38 = vector.shape_cast %37 : vector<1x32x32xf32> to vector<32x32xf32>
    %39 = vector.extract_strided_slice %38 {offsets = [0, 0], sizes = [8, 24], strides = [1, 1]} : vector<32x32xf32> to vector<8x24xf32>
    %cst_18 = arith.constant dense<0.000000e+00> : vector<8x128xf32>
    %40 = tpu.matmul %39, %36, %cst_18 {dimension_numbers = #tpu.dot_dimension_numbers<[1], [0], [0], [1], [0, 0, 1, 1], [], []>} : vector<8x24xf32>, vector<24x128xf32>, vector<8x128xf32> -> vector<8x128xf32>
    %41 = vector.extract_strided_slice %40 {offsets = [0, 0], sizes = [1, 128], strides = [1, 1]} : vector<8x128xf32> to vector<1x128xf32>
    %42 = vector.extract_strided_slice %38 {offsets = [0, 31], sizes = [1, 1], strides = [1, 1]} : vector<32x32xf32> to vector<1x1xf32>
    %43 = vector.broadcast %42 : vector<1x1xf32> to vector<1x128xf32>
    %44 = arith.addf %41, %43 : vector<1x128xf32>
    %c0_19 = arith.constant 0 : index
    %c0_20 = arith.constant 0 : index
    %45 = vector.load %arg3[%c0_19, %c0_20] : memref<1x128xf32, #tpu.memory_space<vmem>>, vector<1x128xf32>
    tpu.vector_store %arg3[%c0_19, %c0_20], %44 {strides = array<i32>} : memref<1x128xf32, #tpu.memory_space<vmem>>, vector<1x128xf32>,
    return
  }
  func.func @transform_0(%arg0: i32) -> (i32, i32) {
    %c0_i32 = arith.constant 0 : i32
    %c0_i32_0 = arith.constant 0 : i32
    return %c0_i32, %arg0 : i32, i32
  }
  func.func @transform_1(%arg0: i32) -> (i32, i32, i32) {
    %c0_i32 = arith.constant 0 : i32
    %c0_i32_0 = arith.constant 0 : i32
    %c0_i32_1 = arith.constant 0 : i32
    %c0_i32_2 = arith.constant 0 : i32
    return %c0_i32, %c0_i32_0, %c0_i32_1 : i32, i32, i32
  }
  func.func @transform_2(%arg0: i32) -> (i32, i32) {
    %c0_i32 = arith.constant 0 : i32
    %c0_i32_0 = arith.constant 0 : i32
    return %c0_i32, %arg0 : i32, i32
  }
}

</mosaic_0001>

<llo_original>
// kernel: mlp_forward.1
$region0: #{mlp_forward.1}
  #allocation0 [shape = 'u32[]', space=smem, size = 0x4, offset = 0x4, fixed_abs, tag = 'smem constant byte address 0x4 - core index']
  #allocation1 [shape = 'u32[144,128]{1,0:T(1,128)}', space=vmem, size = 0x12000, scoped, tag = 'internal scratch']
  %s0 = inlined_call_operand.vmem [shape: f32[8,256], index: 0, kind: input, shape index: {}]
  %s1 = inlined_call_operand.hbm [shape: f32[6,32,32], index: 1, kind: input, shape index: {}]
  %s2 = inlined_call_operand.vmem [shape: f32[1,256], index: 2, kind: output, shape index: {}]
  %s3 = sld [smem:[#allocation0]]
  $region45: #{mlp_forward.1} parent=0
    _
  %s5 = ssub.s32 1, %s3
  %s6 = scalar_select 0, %s5, %s3
  $region1: #{mlp_forward.1} parent=0
    #allocation2 [shape = 'u8[98304]{0}', space=vmem, size = 0x18000, scoped, tag = 'input window, operand 1, single buffered']
    #allocation3 [shape = 's32[2]{0}', space=sflag, size = 0x8, scoped, tag = 'scoped memory for mlp_forward.1']
    %7 = vsyncpa [#allocation3], 0
    loop: start=0, step=1, limit=4
    $region2: #{mlp_forward.1} parent=1 // loop_pre_header
      _
    $region3: #{mlp_forward.1} parent=1 // loop_header
      %s9 = sphi 0, %s13
      %p10 = scmp.ge.s32.totalorder %s9, 4
      %s19 = sphi 0, %s21
      %s22 = sphi 0, %s19
      %s23 = sphi 0, %s22
      %s39 = sphi 0, %s23
      %s43 = sphi 0, %s43
      %s45 = sphi 0, %s43
      %s46 = sphi 0, %s45
      %s60 = sphi 0, %s46
      %s66 = sphi 0, %s68
      %s69 = sphi 0, %s66
      %s70 = sphi 0, %s69
      %s86 = sphi 0, %s70
    $region4: #{mlp_forward.1} parent=1 // loop_header_branch
      %12 = sbr.rel (%p10) target = $region8
    $region5: #{mlp_forward.1} parent=1 // loop_body
      %s14 = ssub.s32 %s9, 1
      %s15 = ssub.s32 %s9, 2
      %s16 = sadd.s32 %s9, 1
      %s17 = ssub.s32 %s9, %s16
      %p18 = scmp.eq.s32.totalorder %s17, 0
      %s20 = sadd.s32 %s19, 1
      %s21 = scalar_select %p18, %s19, %s20
      %p24 = pneg %p18
      %p25 = scmp.eq.s32.totalorder %s9, 1
      %p26 = por %p24, %p25
      %p27 = scmp.ne.s32.totalorder %s19, %s22
      %p28 = scmp.eq.s32.totalorder %s9, 0
      %p29 = por %p27, %p28
      %p30 = scmp.ne.s32.totalorder %s19, %s22
      %p31 = scmp.eq.s32.totalorder %s14, 1
      %p32 = por %p30, %p31
      %p33 = scmp.ne.s32.totalorder %s22, %s23
      %p34 = scmp.eq.s32.totalorder %s14, 0
      %p35 = por %p33, %p34
      %p36 = scmp.ne.s32.totalorder %s22, %s23
      %p37 = scmp.eq.s32.totalorder %s15, 1
      %p38 = por %p36, %p37
      %p40 = scmp.ne.s32.totalorder %s23, %s39
      %p41 = scmp.eq.s32.totalorder %s15, 0
      %p42 = por %p40, %p41
      %s44 = sadd.s32 %s43, 1
      %p47 = scmp.eq.s32.totalorder %s9, 1
      %p48 = scmp.ne.s32.totalorder %s43, %s45
      %p49 = scmp.eq.s32.totalorder %s9, 0
      %p50 = por %p48, %p49
      %p51 = scmp.ne.s32.totalorder %s43, %s45
      %p52 = scmp.eq.s32.totalorder %s14, 1
      %p53 = por %p51, %p52
      %p54 = scmp.ne.s32.totalorder %s45, %s46
      %p55 = scmp.eq.s32.totalorder %s14, 0
      %p56 = por %p54, %p55
      %p57 = scmp.ne.s32.totalorder %s45, %s46
      %p58 = scmp.eq.s32.totalorder %s15, 1
      %p59 = por %p57, %p58
      %p61 = scmp.ne.s32.totalorder %s46, %s60
      %p62 = scmp.eq.s32.totalorder %s15, 0
      %p63 = por %p61, %p62
      %s64 = ssub.s32 %s9, %s16
      %p65 = scmp.eq.s32.totalorder %s64, 0
      %s67 = sadd.s32 %s66, 1
      %s68 = scalar_select %p65, %s66, %s67
      %p71 = pneg %p65
      %p72 = scmp.eq.s32.totalorder %s9, 1
      %p73 = por %p71, %p72
      %p74 = scmp.ne.s32.totalorder %s66, %s69
      %p75 = scmp.eq.s32.totalorder %s9, 0
      %p76 = por %p74, %p75
      %p77 = scmp.ne.s32.totalorder %s66, %s69
      %p78 = scmp.eq.s32.totalorder %s14, 1
      %p79 = por %p77, %p78
      %p80 = scmp.ne.s32.totalorder %s69, %s70
      %p81 = scmp.eq.s32.totalorder %s14, 0
      %p82 = por %p80, %p81
      %p83 = scmp.ne.s32.totalorder %s69, %s70
      %p84 = scmp.eq.s32.totalorder %s15, 1
      %p85 = por %p83, %p84
      %p87 = scmp.ne.s32.totalorder %s70, %s86
      %p88 = scmp.eq.s32.totalorder %s15, 0
      %p89 = por %p87, %p88
      %p90 = scmp.le.s32.totalorder 1, %s9
      %p91 = scmp.lt.s32.totalorder %s9, 3
      %p92 = pnand %p90, %p91
      %p93 = pneg %p92
      // Predicated region
      $region9: #{mlp_forward.1} parent=5 // pred_check
        _
      $region10: #{mlp_forward.1} parent=5 // pred_check_branch
        %95 = sbr.rel (%p92) target = $region12
      $region11: #{mlp_forward.1} parent=5 // pred_region
        %s96 = ssub.s32 %s9, 1
        // Predicated region
        $region13: #{mlp_forward.1} parent=11 // pred_check
          %p97 = pneg %p56
        $region14: #{mlp_forward.1} parent=11 // pred_check_branch
          %99 = sbr.rel (%p97) target = $region16
        $region15: #{mlp_forward.1} parent=11 // pred_region
          %s101 = ssub.s32 3072, 3072
          %102 = vsyncadd [#allocation3], %s101
          %s103 = sshll.u32 [#allocation2], 4
          %s104 = int_to_ptr.vmem [resolvable:$true] %s103
          %109 = dma.hbm_to_vmem [thread:$0]  %s1, 3072, %s104, [#allocation3], 128, 128, 8
        $region16: #{mlp_forward.1} parent=11 // pred_fallthru
          _
      $region12: #{mlp_forward.1} parent=5 // pred_fallthru
        _
      %p110 = scmp.lt.s32.totalorder %s9, 2
      // Predicated region
      $region17: #{mlp_forward.1} parent=5 // pred_check
        %p111 = pneg %p110
      $region18: #{mlp_forward.1} parent=5 // pred_check_branch
        %113 = sbr.rel (%p111) target = $region20
      $region19: #{mlp_forward.1} parent=5 // pred_region
        // Predicated region
        $region21: #{mlp_forward.1} parent=19 // pred_check
          %p114 = pneg %p29
        $region22: #{mlp_forward.1} parent=19 // pred_check_branch
          %116 = sbr.rel (%p114) target = $region24
        $region23: #{mlp_forward.1} parent=19 // pred_region
          %p117 = scmp.lt.s32.totalorder %s9, 1
          %s118 = scalar_select %p117, %s9, 1
          %s119 = smul.addr %s118, 8
          %s120 = scalar_lea.vmem %s0, %s119
        $region24: #{mlp_forward.1} parent=19 // pred_fallthru
          _
      $region20: #{mlp_forward.1} parent=5 // pred_fallthru
        _
      %p121 = scmp.le.s32.totalorder 1, %s9
      %p122 = scmp.lt.s32.totalorder %s9, 3
      %p123 = pnand %p121, %p122
      %p124 = pneg %p123
      // Predicated region
      $region25: #{mlp_forward.1} parent=5 // pred_check
        _
      $region26: #{mlp_forward.1} parent=5 // pred_check_branch
        %126 = sbr.rel (%p123) target = $region28
      $region27: #{mlp_forward.1} parent=5 // pred_region
        %s127 = ssub.s32 %s9, 1
        // Predicated region
        $region29: #{mlp_forward.1} parent=27 // pred_check
          %p128 = pneg %p56
        $region30: #{mlp_forward.1} parent=27 // pred_check_branch
          %130 = sbr.rel (%p128) target = $region32
        $region31: #{mlp_forward.1} parent=27 // pred_region
          %131 = dma.done [#allocation3], 3072
        $region32: #{mlp_forward.1} parent=27 // pred_fallthru
          _
        %p132 = scmp.lt.s32.totalorder %s14, 1
        %s133 = scalar_select %p132, %s14, 1
        %s134 = smul.addr %s133, 8
        %s135 = scalar_lea.vmem %s0, %s134
        %p136 = pneg %p35
        %p137 = pneg %p32
        %p138 = pneg %p56
        %p139 = pneg %p53
        %p140 = pneg %p82
        %p141 = pneg %p79
        %p142 = scmp.lt.s32.totalorder %s14, 1
        %s143 = scalar_select %p142, %s14, 1
        %s144 = scalar_lea.vmem %s2, %s143
        %p145 = scmp.lt.s32.totalorder %s14, 1
        %s146 = scalar_select %p145, %s14, 1
        %s147 = smul.addr %s146, 8
        %s148 = scalar_lea.vmem %s0, %s147
        %p149 = scmp.lt.s32.totalorder %s14, 1
        %s150 = scalar_select %p149, %s14, 1
        %s151 = scalar_lea.vmem %s2, %s150
        %v152 = vld [vmem:[%s148] sm:$0xff]
        %v153 = vld [vmem:[#allocation2] sm:$0xff]
        %v154 = vld [vmem:[#allocation2 + $0x8] sm:$0xff]
        %v155 = vld [vmem:[#allocation2 + $0x10] sm:$0xff]
        %vm156 = vcmask 64512
        %v158 = vsel %vm156, %v153, 0
        %v161 = vsel %vm156, %v154, 0
        %v164 = vsel %vm156, %v155, 0
        %166 = vmatprep.subr.mxu0 0.0
        %167 = vmatpush1.msra.mxu0 %v152
        %168 = vmatprep.subr.mxu0 0.0
        %169 = vmatpush1.msra.mxu0 0.0
        %170 = vmatprep.subr.mxu0 0.0
        %171 = vmatpush1.msra.mxu0 0.0
        %172 = vmatprep.subr.mxu0 0.0
        %173 = vmatpush1.msra.mxu0 0.0
        %174 = vmatprep.subr.mxu0 0.0
        %175 = vmatpush1.msra.mxu0 0.0
        %176 = vmatprep.subr.mxu0 0.0
        %177 = vmatpush1.msra.mxu0 0.0
        %178 = vmatprep.subr.mxu0 0.0
        %179 = vmatpush1.msra.mxu0 0.0
        %180 = vmatprep.subr.mxu0 0.0
        %181 = vmatpush1.msra.mxu0 0.0
        %182 = vmatprep.subr.mxu0 0.0
        %183 = vmatpush1.msra.mxu0 0.0
        %184 = vmatprep.subr.mxu0 0.0
        %185 = vmatpush1.msra.mxu0 0.0
        %186 = vmatprep.subr.mxu0 0.0
        %187 = vmatpush1.msra.mxu0 0.0
        %188 = vmatprep.subr.mxu0 0.0
        %189 = vmatpush1.msra.mxu0 0.0
        %190 = vmatprep.subr.mxu0 0.0
        %191 = vmatpush1.msra.mxu0 0.0
        %192 = vmatprep.subr.mxu0 0.0
        %193 = vmatpush1.msra.mxu0 0.0
        %194 = vmatprep.subr.mxu0 0.0
        %195 = vmatpush1.msra.mxu0 0.0
        %196 = vmatprep.subr.mxu0 0.0
        %197 = vmatpush1.msra.mxu0 0.0
        %198 = vmatprep.subr.mxu0 0.0
        %199 = vmatpush1.msra.mxu0 0.0
        %200 = vmatprep.subr.mxu0 0.0
        %201 = vmatpush1.msra.mxu0 0.0
        %202 = vmatprep.subr.mxu0 0.0
        %203 = vmatpush1.msra.mxu0 0.0
        %204 = vmatprep.subr.mxu0 0.0
        %205 = vmatpush1.msra.mxu0 0.0
        %206 = vmatprep.subr.mxu0 0.0
        %207 = vmatpush1.msra.mxu0 0.0
        %208 = vmatprep.subr.mxu0 0.0
        %209 = vmatpush1.msra.mxu0 0.0
        %210 = vmatprep.subr.mxu0 0.0
        %211 = vmatpush1.msra.mxu0 0.0
        %212 = vmatprep.subr.mxu0 0.0
        %213 = vmatpush1.msra.mxu0 0.0
        %214 = vmatprep.subr.mxu0 0.0
        %215 = vmatpush1.msra.mxu0 0.0
        %216 = vmatprep.subr.mxu0 0.0
        %217 = vmatpush1.msra.mxu0 0.0
        %218 = vmatprep.subr.mxu0 0.0
        %219 = vmatpush1.msra.mxu0 0.0
        %220 = vmatprep.subr.mxu0 0.0
        %221 = vmatpush1.msra.mxu0 0.0
        %222 = vmatprep.subr.mxu0 0.0
        %223 = vmatpush1.msra.mxu0 0.0
        %224 = vmatprep.subr.mxu0 0.0
        %225 = vmatpush1.msra.mxu0 0.0
        %226 = vmatprep.subr.mxu0 0.0
        %227 = vmatpush1.msra.mxu0 0.0
        %228 = vmatprep.subr.mxu0 0.0
        %229 = vmatpush1.msra.mxu0 0.0
        %230 = vmatprep.mubr.f32.mxu0 0.0
        %231 = vmatmul.mubr.f32.gmra.mrb[0].mxu0 %v158
        %v232 = vpop.f32.mrb[0].mxu0
        %v233 = vadd.f32 0.0, %v232
        %v234 = vpop.f32.mrb[0].mxu0
        %235 = vmatprep.mubr.f32.mxu0 0.0
        %236 = vmatmul.mubr.f32.gmra.mrb[0].mxu0 %v161
        %v237 = vpop.f32.mrb[0].mxu0
        %v238 = vadd.f32 0.0, %v237
        %v239 = vpop.f32.mrb[0].mxu0
        %240 = vmatprep.mubr.f32.mxu0 0.0
        %241 = vmatmul.mubr.f32.gmra.mrb[0].mxu0 %v164
        %v242 = vpop.f32.mrb[0].mxu0
        %v243 = vadd.f32 0.0, %v242
        %v244 = vpop.f32.mrb[0].mxu0
        %245 = vdwg.mxu0
        %v246 = vtanh.pop %v233
        %v247 = vtanh.pop %v238
        %v248 = vtanh.pop %v243
        %s249 = scalar_lea.vmem [#allocation2], 32
        %v250 = vld [vmem:[%s249] sm:$0xff]
        %v251 = vld [vmem:[%s249 + $0x8] sm:$0xff]
        %v252 = vld [vmem:[%s249 + $0x10] sm:$0xff]
        %v253 = vld [vmem:[%s249 + $0x18] sm:$0xff]
        %255 = vset.pattern.permute.xlu0 31
        %256 = vperm.xlu0 %255, %v250
        %v257 = vpop.permute.xlu0 %256
        %260 = vset.pattern.permute.xlu0 31
        %261 = vperm.xlu0 %260, %v251
        %v262 = vpop.permute.xlu0 %261
        %265 = vset.pattern.permute.xlu0 31
        %266 = vperm.xlu0 %265, %v252
        %v267 = vpop.permute.xlu0 %266
        %270 = vset.pattern.permute.xlu0 31
        %271 = vperm.xlu0 %270, %v253
        %v272 = vpop.permute.xlu0 %271
        %vm274 = vcmask 195584
        %v275 = vsel %vm274, %v250, 0
        %v277 = vsel %vm274, %v251, 0
        %v279 = vsel %vm274, %v252, 0
        %v281 = vsel %vm274, %v253, 0
        %283 = vmatprep.subr.mxu0 0.0
        %284 = vmatpush1.msra.mxu0 %v246
        %285 = vmatprep.subr.mxu0 0.0
        %286 = vmatpush1.msra.mxu0 %v247
        %287 = vmatprep.subr.mxu0 0.0
        %288 = vmatpush1.msra.mxu0 %v248
        %289 = vmatprep.subr.mxu0 0.0
        %290 = vmatpush1.msra.mxu0 0.0
        %291 = vmatprep.subr.mxu0 0.0
        %292 = vmatpush1.msra.mxu0 0.0
        %293 = vmatprep.subr.mxu0 0.0
        %294 = vmatpush1.msra.mxu0 0.0
        %295 = vmatprep.subr.mxu0 0.0
        %296 = vmatpush1.msra.mxu0 0.0
        %297 = vmatprep.subr.mxu0 0.0
        %298 = vmatpush1.msra.mxu0 0.0
        %299 = vmatprep.subr.mxu0 0.0
        %300 = vmatpush1.msra.mxu0 0.0
        %301 = vmatprep.subr.mxu0 0.0
        %302 = vmatpush1.msra.mxu0 0.0
        %303 = vmatprep.subr.mxu0 0.0
        %304 = vmatpush1.msra.mxu0 0.0
        %305 = vmatprep.subr.mxu0 0.0
        %306 = vmatpush1.msra.mxu0 0.0
        %307 = vmatprep.subr.mxu0 0.0
        %308 = vmatpush1.msra.mxu0 0.0
        %309 = vmatprep.subr.mxu0 0.0
        %310 = vmatpush1.msra.mxu0 0.0
        %311 = vmatprep.subr.mxu0 0.0
        %312 = vmatpush1.msra.mxu0 0.0
        %313 = vmatprep.subr.mxu0 0.0
        %314 = vmatpush1.msra.mxu0 0.0
        %315 = vmatprep.subr.mxu0 0.0
        %316 = vmatpush1.msra.mxu0 0.0
        %317 = vmatprep.subr.mxu0 0.0
        %318 = vmatpush1.msra.mxu0 0.0
        %319 = vmatprep.subr.mxu0 0.0
        %320 = vmatpush1.msra.mxu0 0.0
        %321 = vmatprep.subr.mxu0 0.0
        %322 = vmatpush1.msra.mxu0 0.0
        %323 = vmatprep.subr.mxu0 0.0
        %324 = vmatpush1.msra.mxu0 0.0
        %325 = vmatprep.subr.mxu0 0.0
        %326 = vmatpush1.msra.mxu0 0.0
        %327 = vmatprep.subr.mxu0 0.0
        %328 = vmatpush1.msra.mxu0 0.0
        %329 = vmatprep.subr.mxu0 0.0
        %330 = vmatpush1.msra.mxu0 0.0
        %331 = vmatprep.subr.mxu0 0.0
        %332 = vmatpush1.msra.mxu0 0.0
        %333 = vmatprep.subr.mxu0 0.0
        %334 = vmatpush1.msra.mxu0 0.0
        %335 = vmatprep.subr.mxu0 0.0
        %336 = vmatpush1.msra.mxu0 0.0
        %337 = vmatprep.subr.mxu0 0.0
        %338 = vmatpush1.msra.mxu0 0.0
        %339 = vmatprep.subr.mxu0 0.0
        %340 = vmatpush1.msra.mxu0 0.0
        %341 = vmatprep.subr.mxu0 0.0
        %342 = vmatpush1.msra.mxu0 0.0
        %343 = vmatprep.subr.mxu0 0.0
        %344 = vmatpush1.msra.mxu0 0.0
        %345 = vmatprep.subr.mxu0 0.0
        %346 = vmatpush1.msra.mxu0 0.0
        %347 = vmatprep.mubr.f32.mxu0 0.0
        %348 = vmatmul.mubr.f32.gmra.mrb[0].mxu0 %v275
        %v349 = vpop.f32.mrb[0].mxu0
        %v350 = vadd.f32 %v257, %v349
        %v351 = vpop.f32.mrb[0].mxu0
        %352 = vmatprep.mubr.f32.mxu0 0.0
        %353 = vmatmul.mubr.f32.gmra.mrb[0].mxu0 %v277
        %v354 = vpop.f32.mrb[0].mxu0
        %v355 = vadd.f32 %v262, %v354
        %v356 = vpop.f32.mrb[0].mxu0
        %357 = vmatprep.mubr.f32.mxu0 0.0
        %358 = vmatmul.mubr.f32.gmra.mrb[0].mxu0 %v279
        %v359 = vpop.f32.mrb[0].mxu0
        %v360 = vadd.f32 %v267, %v359
        %v361 = vpop.f32.mrb[0].mxu0
        %362 = vmatprep.mubr.f32.mxu0 0.0
        %363 = vmatmul.mubr.f32.gmra.mrb[0].mxu0 %v281
        %v364 = vpop.f32.mrb[0].mxu0
        %v365 = vadd.f32 %v272, %v364
        %v366 = vpop.f32.mrb[0].mxu0
        %367 = vdwg.mxu0
        %v368 = vtanh.pop %v350
        %v369 = vtanh.pop %v355
        %v370 = vtanh.pop %v360
        %v371 = vtanh.pop %v365
        %s372 = scalar_lea.vmem [#allocation2], 64
        %v373 = vld [vmem:[%s372] sm:$0xff]
        %v374 = vld [vmem:[%s372 + $0x8] sm:$0xff]
        %v375 = vld [vmem:[%s372 + $0x10] sm:$0xff]
        %v376 = vld [vmem:[%s372 + $0x18] sm:$0xff]
        %378 = vset.pattern.permute.xlu0 31
        %379 = vperm.xlu0 %378, %v373
        %v380 = vpop.permute.xlu0 %379
        %383 = vset.pattern.permute.xlu0 31
        %384 = vperm.xlu0 %383, %v374
        %v385 = vpop.permute.xlu0 %384
        %388 = vset.pattern.permute.xlu0 31
        %389 = vperm.xlu0 %388, %v375
        %v390 = vpop.permute.xlu0 %389
        %393 = vset.pattern.permute.xlu0 31
        %394 = vperm.xlu0 %393, %v376
        %v395 = vpop.permute.xlu0 %394
        %vm397 = vcmask 261120
        %v398 = vsel %vm397, %v373, 0
        %v400 = vsel %vm397, %v374, 0
        %v402 = vsel %vm397, %v375, 0
        %v404 = vsel %vm397, %v376, 0
        %406 = vmatprep.subr.mxu0 0.0
        %407 = vmatpush1.msra.mxu0 %v368
        %408 = vmatprep.subr.mxu0 0.0
        %409 = vmatpush1.msra.mxu0 %v369
        %410 = vmatprep.subr.mxu0 0.0
        %411 = vmatpush1.msra.mxu0 %v370
        %412 = vmatprep.subr.mxu0 0.0
        %413 = vmatpush1.msra.mxu0 %v371
        %414 = vmatprep.subr.mxu0 0.0
        %415 = vmatpush1.msra.mxu0 0.0
        %416 = vmatprep.subr.mxu0 0.0
        %417 = vmatpush1.msra.mxu0 0.0
        %418 = vmatprep.subr.mxu0 0.0
        %419 = vmatpush1.msra.mxu0 0.0
        %420 = vmatprep.subr.mxu0 0.0
        %421 = vmatpush1.msra.mxu0 0.0
        %422 = vmatprep.subr.mxu0 0.0
        %423 = vmatpush1.msra.mxu0 0.0
        %424 = vmatprep.subr.mxu0 0.0
        %425 = vmatpush1.msra.mxu0 0.0
        %426 = vmatprep.subr.mxu0 0.0
        %427 = vmatpush1.msra.mxu0 0.0
        %428 = vmatprep.subr.mxu0 0.0
        %429 = vmatpush1.msra.mxu0 0.0
        %430 = vmatprep.subr.mxu0 0.0
        %431 = vmatpush1.msra.mxu0 0.0
        %432 = vmatprep.subr.mxu0 0.0
        %433 = vmatpush1.msra.mxu0 0.0
        %434 = vmatprep.subr.mxu0 0.0
        %435 = vmatpush1.msra.mxu0 0.0
        %436 = vmatprep.subr.mxu0 0.0
        %437 = vmatpush1.msra.mxu0 0.0
        %438 = vmatprep.subr.mxu0 0.0
        %439 = vmatpush1.msra.mxu0 0.0
        %440 = vmatprep.subr.mxu0 0.0
        %441 = vmatpush1.msra.mxu0 0.0
        %442 = vmatprep.subr.mxu0 0.0
        %443 = vmatpush1.msra.mxu0 0.0
        %444 = vmatprep.subr.mxu0 0.0
        %445 = vmatpush1.msra.mxu0 0.0
        %446 = vmatprep.subr.mxu0 0.0
        %447 = vmatpush1.msra.mxu0 0.0
        %448 = vmatprep.subr.mxu0 0.0
        %449 = vmatpush1.msra.mxu0 0.0
        %450 = vmatprep.subr.mxu0 0.0
        %451 = vmatpush1.msra.mxu0 0.0
        %452 = vmatprep.subr.mxu0 0.0
        %453 = vmatpush1.msra.mxu0 0.0
        %454 = vmatprep.subr.mxu0 0.0
        %455 = vmatpush1.msra.mxu0 0.0
        %456 = vmatprep.subr.mxu0 0.0
        %457 = vmatpush1.msra.mxu0 0.0
        %458 = vmatprep.subr.mxu0 0.0
        %459 = vmatpush1.msra.mxu0 0.0
        %460 = vmatprep.subr.mxu0 0.0
        %461 = vmatpush1.msra.mxu0 0.0
        %462 = vmatprep.subr.mxu0 0.0
        %463 = vmatpush1.msra.mxu0 0.0
        %464 = vmatprep.subr.mxu0 0.0
        %465 = vmatpush1.msra.mxu0 0.0
        %466 = vmatprep.subr.mxu0 0.0
        %467 = vmatpush1.msra.mxu0 0.0
        %468 = vmatprep.subr.mxu0 0.0
        %469 = vmatpush1.msra.mxu0 0.0
        %470 = vmatprep.mubr.f32.mxu0 0.0
        %471 = vmatmul.mubr.f32.gmra.mrb[0].mxu0 %v398
        %v472 = vpop.f32.mrb[0].mxu0
        %v473 = vadd.f32 %v380, %v472
        %v474 = vpop.f32.mrb[0].mxu0
        %475 = vmatprep.mubr.f32.mxu0 0.0
        %476 = vmatmul.mubr.f32.gmra.mrb[0].mxu0 %v400
        %v477 = vpop.f32.mrb[0].mxu0
        %v478 = vadd.f32 %v385, %v477
        %v479 = vpop.f32.mrb[0].mxu0
        %480 = vmatprep.mubr.f32.mxu0 0.0
        %481 = vmatmul.mubr.f32.gmra.mrb[0].mxu0 %v402
        %v482 = vpop.f32.mrb[0].mxu0
        %v483 = vadd.f32 %v390, %v482
        %v484 = vpop.f32.mrb[0].mxu0
        %485 = vmatprep.mubr.f32.mxu0 0.0
        %486 = vmatmul.mubr.f32.gmra.mrb[0].mxu0 %v404
        %v487 = vpop.f32.mrb[0].mxu0
        %v488 = vadd.f32 %v395, %v487
        %v489 = vpop.f32.mrb[0].mxu0
        %490 = vdwg.mxu0
        %v491 = vtanh.pop %v473
        %v492 = vtanh.pop %v478
        %v493 = vtanh.pop %v483
        %v494 = vtanh.pop %v488
        %s495 = scalar_lea.vmem [#allocation2], 96
        %v496 = vld [vmem:[%s495] sm:$0xff]
        %v497 = vld [vmem:[%s495 + $0x8] sm:$0xff]
        %v498 = vld [vmem:[%s495 + $0x10] sm:$0xff]
        %500 = vset.pattern.permute.xlu0 31
        %501 = vperm.xlu0 %500, %v496
        %v502 = vpop.permute.xlu0 %501
        %505 = vset.pattern.permute.xlu0 31
        %506 = vperm.xlu0 %505, %v497
        %v507 = vpop.permute.xlu0 %506
        %510 = vset.pattern.permute.xlu0 31
        %511 = vperm.xlu0 %510, %v498
        %v512 = vpop.permute.xlu0 %511
        %v514 = vsel %vm397, %v496, 0
        %v516 = vsel %vm397, %v497, 0
        %v518 = vsel %vm397, %v498, 0
        %520 = vmatprep.subr.mxu0 0.0
        %521 = vmatpush1.msra.mxu0 %v491
        %522 = vmatprep.subr.mxu0 0.0
        %523 = vmatpush1.msra.mxu0 %v492
        %524 = vmatprep.subr.mxu0 0.0
        %525 = vmatpush1.msra.mxu0 %v493
        %526 = vmatprep.subr.mxu0 0.0
        %527 = vmatpush1.msra.mxu0 %v494
        %528 = vmatprep.subr.mxu0 0.0
        %529 = vmatpush1.msra.mxu0 0.0
        %530 = vmatprep.subr.mxu0 0.0
        %531 = vmatpush1.msra.mxu0 0.0
        %532 = vmatprep.subr.mxu0 0.0
        %533 = vmatpush1.msra.mxu0 0.0
        %534 = vmatprep.subr.mxu0 0.0
        %535 = vmatpush1.msra.mxu0 0.0
        %536 = vmatprep.subr.mxu0 0.0
        %537 = vmatpush1.msra.mxu0 0.0
        %538 = vmatprep.subr.mxu0 0.0
        %539 = vmatpush1.msra.mxu0 0.0
        %540 = vmatprep.subr.mxu0 0.0
        %541 = vmatpush1.msra.mxu0 0.0
        %542 = vmatprep.subr.mxu0 0.0
        %543 = vmatpush1.msra.mxu0 0.0
        %544 = vmatprep.subr.mxu0 0.0
        %545 = vmatpush1.msra.mxu0 0.0
        %546 = vmatprep.subr.mxu0 0.0
        %547 = vmatpush1.msra.mxu0 0.0
        %548 = vmatprep.subr.mxu0 0.0
        %549 = vmatpush1.msra.mxu0 0.0
        %550 = vmatprep.subr.mxu0 0.0
        %551 = vmatpush1.msra.mxu0 0.0
        %552 = vmatprep.subr.mxu0 0.0
        %553 = vmatpush1.msra.mxu0 0.0
        %554 = vmatprep.subr.mxu0 0.0
        %555 = vmatpush1.msra.mxu0 0.0
        %556 = vmatprep.subr.mxu0 0.0
        %557 = vmatpush1.msra.mxu0 0.0
        %558 = vmatprep.subr.mxu0 0.0
        %559 = vmatpush1.msra.mxu0 0.0
        %560 = vmatprep.subr.mxu0 0.0
        %561 = vmatpush1.msra.mxu0 0.0
        %562 = vmatprep.subr.mxu0 0.0
        %563 = vmatpush1.msra.mxu0 0.0
        %564 = vmatprep.subr.mxu0 0.0
        %565 = vmatpush1.msra.mxu0 0.0
        %566 = vmatprep.subr.mxu0 0.0
        %567 = vmatpush1.msra.mxu0 0.0
        %568 = vmatprep.subr.mxu0 0.0
        %569 = vmatpush1.msra.mxu0 0.0
        %570 = vmatprep.subr.mxu0 0.0
        %571 = vmatpush1.msra.mxu0 0.0
        %572 = vmatprep.subr.mxu0 0.0
        %573 = vmatpush1.msra.mxu0 0.0
        %574 = vmatprep.subr.mxu0 0.0
        %575 = vmatpush1.msra.mxu0 0.0
        %576 = vmatprep.subr.mxu0 0.0
        %577 = vmatpush1.msra.mxu0 0.0
        %578 = vmatprep.subr.mxu0 0.0
        %579 = vmatpush1.msra.mxu0 0.0
        %580 = vmatprep.subr.mxu0 0.0
        %581 = vmatpush1.msra.mxu0 0.0
        %582 = vmatprep.subr.mxu0 0.0
        %583 = vmatpush1.msra.mxu0 0.0
        %584 = vmatprep.mubr.f32.mxu0 0.0
        %585 = vmatmul.mubr.f32.gmra.mrb[0].mxu0 %v514
        %v586 = vpop.f32.mrb[0].mxu0
        %v587 = vadd.f32 %v502, %v586
        %v588 = vpop.f32.mrb[0].mxu0
        %589 = vmatprep.mubr.f32.mxu0 0.0
        %590 = vmatmul.mubr.f32.gmra.mrb[0].mxu0 %v516
        %v591 = vpop.f32.mrb[0].mxu0
        %v592 = vadd.f32 %v507, %v591
        %v593 = vpop.f32.mrb[0].mxu0
        %594 = vmatprep.mubr.f32.mxu0 0.0
        %595 = vmatmul.mubr.f32.gmra.mrb[0].mxu0 %v518
        %v596 = vpop.f32.mrb[0].mxu0
        %v597 = vadd.f32 %v512, %v596
        %v598 = vpop.f32.mrb[0].mxu0
        %599 = vdwg.mxu0
        %v600 = vtanh.pop %v587
        %v601 = vtanh.pop %v592
        %v602 = vtanh.pop %v597
        %s603 = scalar_lea.vmem [#allocation2], 128
        %v604 = vld [vmem:[%s603] sm:$0xff]
        %v605 = vld [vmem:[%s603 + $0x8] sm:$0xff]
        %v606 = vld [vmem:[%s603 + $0x10] sm:$0xff]
        %608 = vset.pattern.permute.xlu0 31
        %609 = vperm.xlu0 %608, %v604
        %v610 = vpop.permute.xlu0 %609
        %613 = vset.pattern.permute.xlu0 31
        %614 = vperm.xlu0 %613, %v605
        %v615 = vpop.permute.xlu0 %614
        %618 = vset.pattern.permute.xlu0 31
        %619 = vperm.xlu0 %618, %v606
        %v620 = vpop.permute.xlu0 %619
        %v622 = vsel %vm274, %v604, 0
        %v624 = vsel %vm274, %v605, 0
        %v626 = vsel %vm274, %v606, 0
        %628 = vmatprep.subr.mxu0 0.0
        %629 = vmatpush1.msra.mxu0 %v600
        %630 = vmatprep.subr.mxu0 0.0
        %631 = vmatpush1.msra.mxu0 %v601
        %632 = vmatprep.subr.mxu0 0.0
        %633 = vmatpush1.msra.mxu0 %v602
        %634 = vmatprep.subr.mxu0 0.0
        %635 = vmatpush1.msra.mxu0 0.0
        %636 = vmatprep.subr.mxu0 0.0
        %637 = vmatpush1.msra.mxu0 0.0
        %638 = vmatprep.subr.mxu0 0.0
        %639 = vmatpush1.msra.mxu0 0.0
        %640 = vmatprep.subr.mxu0 0.0
        %641 = vmatpush1.msra.mxu0 0.0
        %642 = vmatprep.subr.mxu0 0.0
        %643 = vmatpush1.msra.mxu0 0.0
        %644 = vmatprep.subr.mxu0 0.0
        %645 = vmatpush1.msra.mxu0 0.0
        %646 = vmatprep.subr.mxu0 0.0
        %647 = vmatpush1.msra.mxu0 0.0
        %648 = vmatprep.subr.mxu0 0.0
        %649 = vmatpush1.msra.mxu0 0.0
        %650 = vmatprep.subr.mxu0 0.0
        %651 = vmatpush1.msra.mxu0 0.0
        %652 = vmatprep.subr.mxu0 0.0
        %653 = vmatpush1.msra.mxu0 0.0
        %654 = vmatprep.subr.mxu0 0.0
        %655 = vmatpush1.msra.mxu0 0.0
        %656 = vmatprep.subr.mxu0 0.0
        %657 = vmatpush1.msra.mxu0 0.0
        %658 = vmatprep.subr.mxu0 0.0
        %659 = vmatpush1.msra.mxu0 0.0
        %660 = vmatprep.subr.mxu0 0.0
        %661 = vmatpush1.msra.mxu0 0.0
        %662 = vmatprep.subr.mxu0 0.0
        %663 = vmatpush1.msra.mxu0 0.0
        %664 = vmatprep.subr.mxu0 0.0
        %665 = vmatpush1.msra.mxu0 0.0
        %666 = vmatprep.subr.mxu0 0.0
        %667 = vmatpush1.msra.mxu0 0.0
        %668 = vmatprep.subr.mxu0 0.0
        %669 = vmatpush1.msra.mxu0 0.0
        %670 = vmatprep.subr.mxu0 0.0
        %671 = vmatpush1.msra.mxu0 0.0
        %672 = vmatprep.subr.mxu0 0.0
        %673 = vmatpush1.msra.mxu0 0.0
        %674 = vmatprep.subr.mxu0 0.0
        %675 = vmatpush1.msra.mxu0 0.0
        %676 = vmatprep.subr.mxu0 0.0
        %677 = vmatpush1.msra.mxu0 0.0
        %678 = vmatprep.subr.mxu0 0.0
        %679 = vmatpush1.msra.mxu0 0.0
        %680 = vmatprep.subr.mxu0 0.0
        %681 = vmatpush1.msra.mxu0 0.0
        %682 = vmatprep.subr.mxu0 0.0
        %683 = vmatpush1.msra.mxu0 0.0
        %684 = vmatprep.subr.mxu0 0.0
        %685 = vmatpush1.msra.mxu0 0.0
        %686 = vmatprep.subr.mxu0 0.0
        %687 = vmatpush1.msra.mxu0 0.0
        %688 = vmatprep.subr.mxu0 0.0
        %689 = vmatpush1.msra.mxu0 0.0
        %690 = vmatprep.subr.mxu0 0.0
        %691 = vmatpush1.msra.mxu0 0.0
        %692 = vmatprep.mubr.f32.mxu0 0.0
        %693 = vmatmul.mubr.f32.gmra.mrb[0].mxu0 %v622
        %v694 = vpop.f32.mrb[0].mxu0
        %v695 = vadd.f32 %v610, %v694
        %v696 = vpop.f32.mrb[0].mxu0
        %697 = vmatprep.mubr.f32.mxu0 0.0
        %698 = vmatmul.mubr.f32.gmra.mrb[0].mxu0 %v624
        %v699 = vpop.f32.mrb[0].mxu0
        %v700 = vadd.f32 %v615, %v699
        %v701 = vpop.f32.mrb[0].mxu0
        %702 = vmatprep.mubr.f32.mxu0 0.0
        %703 = vmatmul.mubr.f32.gmra.mrb[0].mxu0 %v626
        %v704 = vpop.f32.mrb[0].mxu0
        %v705 = vadd.f32 %v620, %v704
        %v706 = vpop.f32.mrb[0].mxu0
        %707 = vdwg.mxu0
        %v708 = vtanh.pop %v695
        %v709 = vtanh.pop %v700
        %v710 = vtanh.pop %v705
        %s711 = scalar_lea.vmem [#allocation2], 160
        %v712 = vld [vmem:[%s711] sm:$0xff]
        %v714 = vsel %vm274, %v712, 0
        %716 = vmatprep.subr.mxu0 0.0
        %717 = vmatpush1.msra.mxu0 %v708
        %718 = vmatprep.subr.mxu0 0.0
        %719 = vmatpush1.msra.mxu0 %v709
        %720 = vmatprep.subr.mxu0 0.0
        %721 = vmatpush1.msra.mxu0 %v710
        %722 = vmatprep.subr.mxu0 0.0
        %723 = vmatpush1.msra.mxu0 0.0
        %724 = vmatprep.subr.mxu0 0.0
        %725 = vmatpush1.msra.mxu0 0.0
        %726 = vmatprep.subr.mxu0 0.0
        %727 = vmatpush1.msra.mxu0 0.0
        %728 = vmatprep.subr.mxu0 0.0
        %729 = vmatpush1.msra.mxu0 0.0
        %730 = vmatprep.subr.mxu0 0.0
        %731 = vmatpush1.msra.mxu0 0.0
        %732 = vmatprep.subr.mxu0 0.0
        %733 = vmatpush1.msra.mxu0 0.0
        %734 = vmatprep.subr.mxu0 0.0
        %735 = vmatpush1.msra.mxu0 0.0
        %736 = vmatprep.subr.mxu0 0.0
        %737 = vmatpush1.msra.mxu0 0.0
        %738 = vmatprep.subr.mxu0 0.0
        %739 = vmatpush1.msra.mxu0 0.0
        %740 = vmatprep.subr.mxu0 0.0
        %741 = vmatpush1.msra.mxu0 0.0
        %742 = vmatprep.subr.mxu0 0.0
        %743 = vmatpush1.msra.mxu0 0.0
        %744 = vmatprep.subr.mxu0 0.0
        %745 = vmatpush1.msra.mxu0 0.0
        %746 = vmatprep.subr.mxu0 0.0
        %747 = vmatpush1.msra.mxu0 0.0
        %748 = vmatprep.subr.mxu0 0.0
        %749 = vmatpush1.msra.mxu0 0.0
        %750 = vmatprep.subr.mxu0 0.0
        %751 = vmatpush1.msra.mxu0 0.0
        %752 = vmatprep.subr.mxu0 0.0
        %753 = vmatpush1.msra.mxu0 0.0
        %754 = vmatprep.subr.mxu0 0.0
        %755 = vmatpush1.msra.mxu0 0.0
        %756 = vmatprep.subr.mxu0 0.0
        %757 = vmatpush1.msra.mxu0 0.0
        %758 = vmatprep.subr.mxu0 0.0
        %759 = vmatpush1.msra.mxu0 0.0
        %760 = vmatprep.subr.mxu0 0.0
        %761 = vmatpush1.msra.mxu0 0.0
        %762 = vmatprep.subr.mxu0 0.0
        %763 = vmatpush1.msra.mxu0 0.0
        %764 = vmatprep.subr.mxu0 0.0
        %765 = vmatpush1.msra.mxu0 0.0
        %766 = vmatprep.subr.mxu0 0.0
        %767 = vmatpush1.msra.mxu0 0.0
        %768 = vmatprep.subr.mxu0 0.0
        %769 = vmatpush1.msra.mxu0 0.0
        %770 = vmatprep.subr.mxu0 0.0
        %771 = vmatpush1.msra.mxu0 0.0
        %772 = vmatprep.subr.mxu0 0.0
        %773 = vmatpush1.msra.mxu0 0.0
        %774 = vmatprep.subr.mxu0 0.0
        %775 = vmatpush1.msra.mxu0 0.0
        %776 = vmatprep.subr.mxu0 0.0
        %777 = vmatpush1.msra.mxu0 0.0
        %778 = vmatprep.subr.mxu0 0.0
        %779 = vmatpush1.msra.mxu0 0.0
        %780 = vmatprep.mubr.f32.mxu0 0.0
        %781 = vmatmul.mubr.f32.gmra.mrb[0].mxu0 %v714
        %v782 = vpop.f32.mrb[0].mxu0
        %v783 = vadd.f32 0.0, %v782
        %v784 = vpop.f32.mrb[0].mxu0
        %785 = vdwg.mxu0
        %786 = vset.pattern.permute.xlu0 31
        %787 = vperm.xlu0 %786, %v712
        %v788 = vpop.permute.xlu0 %787
        %v790 = vadd.f32 %v783, %v788
        %791 = vst [vmem:[%s151] sm:$0x1] %v790
        %p792 = scmp.lt.s32.totalorder %s14, 1
        %s793 = scalar_select %p792, %s14, 1
        %s794 = scalar_lea.vmem %s2, %s793
        // Predicated region
        $region33: #{mlp_forward.1} parent=27 // pred_check
          %p795 = pneg %p79
        $region34: #{mlp_forward.1} parent=27 // pred_check_branch
          %797 = sbr.rel (%p795) target = $region36
        $region35: #{mlp_forward.1} parent=27 // pred_region
          _
        $region36: #{mlp_forward.1} parent=27 // pred_fallthru
          _
      $region28: #{mlp_forward.1} parent=5 // pred_fallthru
        _
      %p798 = scmp.le.s32.totalorder 2, %s9
      // Predicated region
      $region37: #{mlp_forward.1} parent=5 // pred_check
        %p799 = pneg %p798
      $region38: #{mlp_forward.1} parent=5 // pred_check_branch
        %801 = sbr.rel (%p799) target = $region40
      $region39: #{mlp_forward.1} parent=5 // pred_region
        %s802 = ssub.s32 %s9, 2
        // Predicated region
        $region41: #{mlp_forward.1} parent=39 // pred_check
          %p803 = pneg %p85
        $region42: #{mlp_forward.1} parent=39 // pred_check_branch
          %805 = sbr.rel (%p803) target = $region44
        $region43: #{mlp_forward.1} parent=39 // pred_region
          %p806 = scmp.lt.s32.totalorder %s15, 1
          %s807 = scalar_select %p806, %s15, 1
          %s808 = scalar_lea.vmem %s2, %s807
        $region44: #{mlp_forward.1} parent=39 // pred_fallthru
          _
      $region40: #{mlp_forward.1} parent=5 // pred_fallthru
        _
    $region6: #{mlp_forward.1} parent=1 // loop_footer
      %s13 = sadd.s32 1, %s9
    $region7: #{mlp_forward.1} parent=1 // loop_footer_branch
      %8 = sbr.rel target = $region3
    $region8: #{mlp_forward.1} parent=1 // loop_exit
      _
    %809 = vsyncpa [#allocation3], 1
    %s810 = scalar_lea.sflag [#allocation3], 1
    %811 = vsyncpa %s810, 1

</llo_original>
